<compile_context>
chip_gen: v5e
topology: v5e:2x2
jax: 0.10.0
libtpu: 0.0.40
codegen_flags: <defaults>
</compile_context>

<pallas_src>
import functools

import jax
import jax.numpy as jnp
from jax.experimental import pallas as pl
from jax.experimental.pallas import tpu as pltpu

_HID_PAD = 128          # hidden width 50 padded to one lane tile
_NEG_BIG = -1e30        # mask value for padded logit columns


def mlpnet_kernel(x_ref,
                  w1_ref, b1_ref,
                  w2_ref, b2_ref,
                  w3_ref, b3_ref,
                  wf_ref,
                  out_ref,
                  *, nbclasses):
    cdt = w2_ref.dtype          # compute dtype of the matmul operands (bf16/f32)

    x = x_ref[...]

    # layer1: Linear(side, 50, bias=False) + folded BN shift + Hardtanh
    h = jnp.dot(x, w1_ref[...], preferred_element_type=jnp.float32)
    h = jnp.clip(h + b1_ref[...], -1.0, 1.0)

    # layer2
    h = jnp.dot(h.astype(cdt), w2_ref[...], preferred_element_type=jnp.float32)
    h = jnp.clip(h + b2_ref[...], -1.0, 1.0)

    # layer3
    h = jnp.dot(h.astype(cdt), w3_ref[...], preferred_element_type=jnp.float32)
    h = jnp.clip(h + b3_ref[...], -1.0, 1.0)

    # bfc: Linear(50, nbclasses, bias=False)  (class dim padded to 128)
    logits = jnp.dot(h.astype(cdt), wf_ref[...], preferred_element_type=jnp.float32)

    # Mask padded class columns so they do not affect max / sum-exp.
    col = jax.lax.broadcasted_iota(jnp.int32, logits.shape, 1)
    logits = jnp.where(col < nbclasses, logits, jnp.float32(_NEG_BIG))

    # LogSoftmax over the (padded) class dim.
    m = jnp.max(logits, axis=-1, keepdims=True)
    z = logits - m
    lse = jnp.log(jnp.sum(jnp.exp(z), axis=-1, keepdims=True))
    out_ref[...] = z - lse


def _round_up(n, m):
    return ((n + m - 1) // m) * m


def _prepare_weights(params, comp_dtype, hid_pad, cls_pad, eps=1e-5):
    """Fold BN scale into the Linear weights, pad to lane-aligned shapes."""
    side = params["w1"].shape[1]
    in_dims = (side, hid_pad, hid_pad)
    prepped = []
    for i in (1, 2, 3):
        w = params[f"w{i}"].astype(jnp.float32).T                 # (in, 50)
        g = params[f"bn{i}_g"].astype(jnp.float32)
        b = params[f"bn{i}_b"].astype(jnp.float32)
        mu = params[f"bn{i}_m"].astype(jnp.float32)
        var = params[f"bn{i}_v"].astype(jnp.float32)
        scale = g / jnp.sqrt(var + eps)
        shift = b - mu * scale
        w = w * scale[None, :]                                     # fold BN scale
        wp = jnp.zeros((in_dims[i - 1], hid_pad), jnp.float32)
        wp = wp.at[: w.shape[0], : w.shape[1]].set(w)
        bp = jnp.zeros((1, hid_pad), jnp.float32)
        bp = bp.at[0, : shift.shape[0]].set(shift)
        prepped += [wp.astype(comp_dtype), bp]                     # shift stays f32
    wf = params["wf"].astype(jnp.float32).T                        # (50, nbclasses)
    wfp = jnp.zeros((hid_pad, cls_pad), jnp.float32)
    wfp = wfp.at[: wf.shape[0], : wf.shape[1]].set(wf)
    prepped.append(wfp.astype(comp_dtype))
    return prepped


def mlpnet_owt_forward(x, params, *, tb=1024, use_bf16=True):
    """x: any shape whose trailing flatten gives (-1, side), like x.view(-1, side)."""
    side = params["w1"].shape[1]                 # torch Linear weight is (out, in)
    nbclasses = params["wf"].shape[0]
    cls_pad = max(128, _round_up(nbclasses, 128))
    comp_dtype = jnp.bfloat16 if use_bf16 else jnp.float32

    xb = x.reshape(-1, side).astype(comp_dtype)
    B = xb.shape[0]

    w1p, b1, w2p, b2, w3p, b3, wfp = _prepare_weights(
        params, comp_dtype, _HID_PAD, cls_pad)

    # Batch tile: multiple of 8 sublanes, capped by the (rounded) batch size.
    TB = min(_round_up(tb, 8), _round_up(B, 8))
    grid = (pl.cdiv(B, TB),)

    resident = lambda a: pl.BlockSpec(a.shape, lambda i: (0, 0))   # stays in VMEM
    kernel = functools.partial(mlpnet_kernel, nbclasses=nbclasses)

    out = pl.pallas_call(
        kernel,
        out_shape=jax.ShapeDtypeStruct((B, cls_pad), jnp.float32),
        grid=grid,
        in_specs=[
            pl.BlockSpec((TB, side), lambda i: (i, 0)),   # batch-tiled activations
            resident(w1p), resident(b1),
            resident(w2p), resident(b2),
            resident(w3p), resident(b3),
            resident(wfp),
        ],
        out_specs=pl.BlockSpec((TB, cls_pad), lambda i: (i, 0)),   # lane-dense output
        compiler_params=pltpu.CompilerParams(
            dimension_semantics=("parallel",)),
    )(xb, w1p, b1, w2p, b2, w3p, b3, wfp)

    return out[:, :nbclasses]


def make_params(key, side, nbclasses):
    ks = jax.random.split(key, 16)
    hid = 50

    def lin(k, out_f, in_f):
        bound = 1.0 / jnp.sqrt(in_f)
        return jax.random.uniform(k, (out_f, in_f), jnp.float32, -bound, bound)

    params = {
        "w1": lin(ks[0], hid, side),
        "w2": lin(ks[1], hid, hid),
        "w3": lin(ks[2], hid, hid),
        "wf": lin(ks[3], nbclasses, hid),
    }
    for i, base in enumerate(["bn1", "bn2", "bn3"]):
        params[f"{base}_g"] = 1.0 + 0.1 * jax.random.normal(ks[4 + 4 * i], (hid,), jnp.float32)
        params[f"{base}_b"] = 0.1 * jax.random.normal(ks[5 + 4 * i], (hid,), jnp.float32)
        params[f"{base}_m"] = 0.05 * jax.random.normal(ks[6 + 4 * i], (hid,), jnp.float32)
        params[f"{base}_v"] = 1.0 + 0.1 * jax.random.uniform(ks[7 + 4 * i], (hid,), jnp.float32)
    return params


def reference_forward_matched(x, params, *, use_bf16=True):
    """Pure-JAX reference using the same folded/padded/cast operands as the kernel."""
    side = params["w1"].shape[1]
    nbclasses = params["wf"].shape[0]
    cls_pad = max(128, _round_up(nbclasses, 128))
    comp_dtype = jnp.bfloat16 if use_bf16 else jnp.float32
    w1p, b1, w2p, b2, w3p, b3, wfp = _prepare_weights(
        params, comp_dtype, _HID_PAD, cls_pad)
    h = x.reshape(-1, side).astype(comp_dtype).astype(jnp.float32)
    for w, b in ((w1p, b1), (w2p, b2), (w3p, b3)):
        h = jnp.dot(h.astype(comp_dtype), w, preferred_element_type=jnp.float32) + b
        h = jnp.clip(h, -1.0, 1.0)
    logits = jnp.dot(h.astype(comp_dtype), wfp, preferred_element_type=jnp.float32)
    return jax.nn.log_softmax(logits[:, :nbclasses], axis=-1)


def reference_forward_f32(x, params, eps=1e-5):
    """Pure-f32 reference with the original (un-folded) torch-style math."""
    side = params["w1"].shape[1]
    h = x.reshape(-1, side).astype(jnp.float32)
    hp = jax.lax.Precision.HIGHEST
    for i in (1, 2, 3):
        h = jnp.dot(h, params[f"w{i}"].astype(jnp.float32).T, precision=hp)
        scale = params[f"bn{i}_g"] / jnp.sqrt(params[f"bn{i}_v"] + eps)
        shift = params[f"bn{i}_b"] - params[f"bn{i}_m"] * scale
        h = jnp.clip(h * scale + shift, -1.0, 1.0)
    logits = jnp.dot(h, params["wf"].astype(jnp.float32).T, precision=hp)
    return jax.nn.log_softmax(logits, axis=-1)


if __name__ == "__main__":
    side = 32          # input_size
    nbclasses = 10
    key = jax.random.PRNGKey(0)
    kx, kp = jax.random.split(key)

    params = make_params(kp, side, nbclasses)
    # x gets flattened to (-1, side) just like the torch forward's x.view(-1, side)
    x = jax.random.normal(kx, (4, 4, side), jnp.float32)   # -> batch 16 after flatten

    # Default bf16-compute path; small tile (tb=8) so the run exercises a
    # multi-step pipelined batch grid even at this tiny test size.
    out_bf16 = mlpnet_owt_forward(x, params, tb=8, use_bf16=True)
    jax.block_until_ready(out_bf16)
    ref_bf16 = reference_forward_matched(x, params, use_bf16=True)
    assert out_bf16.shape == (16, nbclasses)
    assert jnp.allclose(out_bf16, ref_bf16, atol=1e-3, rtol=1e-3), "bf16 mismatch vs matched reference"

    # f32 path vs the original (un-folded) module semantics.
    out_f32 = mlpnet_owt_forward(x, params, use_bf16=False)
    jax.block_until_ready(out_f32)
    ref_f32 = reference_forward_f32(x, params)
    assert jnp.allclose(out_f32, ref_f32, atol=2e-2, rtol=2e-2), "f32 mismatch vs torch-semantics reference"

    print("KERNEL_OK")
</pallas_src>

<mosaic_0001>
module attributes {stable_mosaic.version = 11 : i64} {
  func.func @mlpnet_kernel(%arg0: i32, %arg1: memref<8x32xbf16, #tpu.memory_space<vmem>>, %arg2: memref<32x128xbf16, #tpu.memory_space<vmem>>, %arg3: memref<1x128xf32, #tpu.memory_space<vmem>>, %arg4: memref<128x128xbf16, #tpu.memory_space<vmem>>, %arg5: memref<1x128xf32, #tpu.memory_space<vmem>>, %arg6: memref<128x128xbf16, #tpu.memory_space<vmem>>, %arg7: memref<1x128xf32, #tpu.memory_space<vmem>>, %arg8: memref<128x128xbf16, #tpu.memory_space<vmem>>, %arg9: memref<8x128xf32, #tpu.memory_space<vmem>>) attributes {dimension_semantics = [#tpu.dimension_semantics<parallel>], iteration_bounds = array<i64: 2>, scalar_prefetch = 0 : i64, scratch_operands = 0 : i64, tpu.core_type = #tpu.core_type<tc>, window_params = [{transform_indices = @transform_0, window_bounds = array<i64: 8, 32>}, {pipeline_mode = #tpu.pipeline_mode<synchronous>, transform_indices = @transform_1, window_bounds = array<i64: 32, 128>}, {pipeline_mode = #tpu.pipeline_mode<synchronous>, transform_indices = @transform_2, window_bounds = array<i64: 1, 128>}, {pipeline_mode = #tpu.pipeline_mode<synchronous>, transform_indices = @transform_3, window_bounds = array<i64: 128, 128>}, {pipeline_mode = #tpu.pipeline_mode<synchronous>, transform_indices = @transform_4, window_bounds = array<i64: 1, 128>}, {pipeline_mode = #tpu.pipeline_mode<synchronous>, transform_indices = @transform_5, window_bounds = array<i64: 128, 128>}, {pipeline_mode = #tpu.pipeline_mode<synchronous>, transform_indices = @transform_6, window_bounds = array<i64: 1, 128>}, {pipeline_mode = #tpu.pipeline_mode<synchronous>, transform_indices = @transform_7, window_bounds = array<i64: 128, 128>}, {transform_indices = @transform_8, window_bounds = array<i64: 8, 128>}]} {
    %c0 = arith.constant 0 : index
    %c0_0 = arith.constant 0 : index
    %0 = vector.load %arg1[%c0, %c0_0] : memref<8x32xbf16, #tpu.memory_space<vmem>>, vector<8x32xbf16>
    %c0_1 = arith.constant 0 : index
    %c0_2 = arith.constant 0 : index
    %1 = vector.load %arg2[%c0_1, %c0_2] : memref<32x128xbf16, #tpu.memory_space<vmem>>, vector<32x128xbf16>
    %cst = arith.constant dense<0.000000e+00> : vector<8x128xf32>
    %2 = tpu.matmul %0, %1, %cst {dimension_numbers = #tpu.dot_dimension_numbers<[1], [0], [0], [1], [0, 0, 1, 1], [], []>} : vector<8x32xbf16>, vector<32x128xbf16>, vector<8x128xf32> -> vector<8x128xf32>
    %c0_3 = arith.constant 0 : index
    %c0_4 = arith.constant 0 : index
    %3 = vector.load %arg3[%c0_3, %c0_4] : memref<1x128xf32, #tpu.memory_space<vmem>>, vector<1x128xf32>
    %4 = vector.broadcast %3 : vector<1x128xf32> to vector<8x128xf32>
    %5 = arith.addf %2, %4 : vector<8x128xf32>
    %cst_5 = arith.constant -1.000000e+00 : f32
    %cst_6 = arith.constant 1.000000e+00 : f32
    %6 = vector.broadcast %cst_5 : f32 to vector<8x128xf32>
    %7 = arith.maximumf %6, %5 : vector<8x128xf32>
    %8 = vector.broadcast %cst_6 : f32 to vector<8x128xf32>
    %9 = arith.minimumf %8, %7 : vector<8x128xf32>
    %10 = arith.truncf %9 : vector<8x128xf32> to vector<8x128xbf16>
    %c0_7 = arith.constant 0 : index
    %c0_8 = arith.constant 0 : index
    %11 = vector.load %arg4[%c0_7, %c0_8] : memref<128x128xbf16, #tpu.memory_space<vmem>>, vector<128x128xbf16>
    %cst_9 = arith.constant dense<0.000000e+00> : vector<8x128xf32>
    %12 = tpu.matmul %10, %11, %cst_9 {dimension_numbers = #tpu.dot_dimension_numbers<[1], [0], [0], [1], [0, 0, 1, 1], [], []>} : vector<8x128xbf16>, vector<128x128xbf16>, vector<8x128xf32> -> vector<8x128xf32>
    %c0_10 = arith.constant 0 : index
    %c0_11 = arith.constant 0 : index
    %13 = vector.load %arg5[%c0_10, %c0_11] : memref<1x128xf32, #tpu.memory_space<vmem>>, vector<1x128xf32>
    %14 = vector.broadcast %13 : vector<1x128xf32> to vector<8x128xf32>
    %15 = arith.addf %12, %14 : vector<8x128xf32>
    %cst_12 = arith.constant -1.000000e+00 : f32
    %cst_13 = arith.constant 1.000000e+00 : f32
    %16 = vector.broadcast %cst_12 : f32 to vector<8x128xf32>
    %17 = arith.maximumf %16, %15 : vector<8x128xf32>
    %18 = vector.broadcast %cst_13 : f32 to vector<8x128xf32>
    %19 = arith.minimumf %18, %17 : vector<8x128xf32>
    %20 = arith.truncf %19 : vector<8x128xf32> to vector<8x128xbf16>
    %c0_14 = arith.constant 0 : index
    %c0_15 = arith.constant 0 : index
    %21 = vector.load %arg6[%c0_14, %c0_15] : memref<128x128xbf16, #tpu.memory_space<vmem>>, vector<128x128xbf16>
    %cst_16 = arith.constant dense<0.000000e+00> : vector<8x128xf32>
    %22 = tpu.matmul %20, %21, %cst_16 {dimension_numbers = #tpu.dot_dimension_numbers<[1], [0], [0], [1], [0, 0, 1, 1], [], []>} : vector<8x128xbf16>, vector<128x128xbf16>, vector<8x128xf32> -> vector<8x128xf32>
    %c0_17 = arith.constant 0 : index
    %c0_18 = arith.constant 0 : index
    %23 = vector.load %arg7[%c0_17, %c0_18] : memref<1x128xf32, #tpu.memory_space<vmem>>, vector<1x128xf32>
    %24 = vector.broadcast %23 : vector<1x128xf32> to vector<8x128xf32>
    %25 = arith.addf %22, %24 : vector<8x128xf32>
    %cst_19 = arith.constant -1.000000e+00 : f32
    %cst_20 = arith.constant 1.000000e+00 : f32
    %26 = vector.broadcast %cst_19 : f32 to vector<8x128xf32>
    %27 = arith.maximumf %26, %25 : vector<8x128xf32>
    %28 = vector.broadcast %cst_20 : f32 to vector<8x128xf32>
    %29 = arith.minimumf %28, %27 : vector<8x128xf32>
    %30 = arith.truncf %29 : vector<8x128xf32> to vector<8x128xbf16>
    %c0_21 = arith.constant 0 : index
    %c0_22 = arith.constant 0 : index
    %31 = vector.load %arg8[%c0_21, %c0_22] : memref<128x128xbf16, #tpu.memory_space<vmem>>, vector<128x128xbf16>
    %cst_23 = arith.constant dense<0.000000e+00> : vector<8x128xf32>
    %32 = tpu.matmul %30, %31, %cst_23 {dimension_numbers = #tpu.dot_dimension_numbers<[1], [0], [0], [1], [0, 0, 1, 1], [], []>} : vector<8x128xbf16>, vector<128x128xbf16>, vector<8x128xf32> -> vector<8x128xf32>
    %33 = tpu.iota {dimensions = array<i32: 1>} : vector<8x128xi32>
    %c10_i32 = arith.constant 10 : i32
    %34 = vector.broadcast %c10_i32 : i32 to vector<8x128xi32>
    %35 = arith.cmpi slt, %33, %34 : vector<8x128xi32>
    %cst_24 = arith.constant -1.000000e+30 : f32
    %36 = vector.broadcast %cst_24 : f32 to vector<8x128xf32>
    %37 = arith.select %35, %32, %36 : vector<8x128xi1>, vector<8x128xf32>
    %cst_25 = arith.constant dense<0xFF800000> : vector<8xf32>
    %38 = vector.multi_reduction <maximumf>, %37, %cst_25 [1] : vector<8x128xf32> to vector<8xf32>
    %39 = vector.shape_cast %38 : vector<8xf32> to vector<8x1xf32>
    %40 = vector.broadcast %39 : vector<8x1xf32> to vector<8x128xf32>
    %41 = arith.subf %37, %40 : vector<8x128xf32>
    %42 = math.exp %41 : vector<8x128xf32>
    %cst_26 = arith.constant dense<0.000000e+00> : vector<8xf32>
    %43 = vector.multi_reduction <add>, %42, %cst_26 [1] : vector<8x128xf32> to vector<8xf32>
    %44 = vector.shape_cast %43 : vector<8xf32> to vector<8x1xf32>
    %45 = math.log %44 : vector<8x1xf32>
    %46 = vector.broadcast %45 : vector<8x1xf32> to vector<8x128xf32>
    %47 = arith.subf %41, %46 : vector<8x128xf32>
    %c0_27 = arith.constant 0 : index
    %c0_28 = arith.constant 0 : index
    %48 = vector.load %arg9[%c0_27, %c0_28] : memref<8x128xf32, #tpu.memory_space<vmem>>, vector<8x128xf32>
    tpu.vector_store %arg9[%c0_27, %c0_28], %47 {strides = array<i32>} : memref<8x128xf32, #tpu.memory_space<vmem>>, vector<8x128xf32>,
    return
  }
  func.func @transform_0(%arg0: i32) -> (i32, i32) {
    %c0_i32 = arith.constant 0 : i32
    %c0_i32_0 = arith.constant 0 : i32
    return %arg0, %c0_i32 : i32, i32
  }
  func.func @transform_1(%arg0: i32) -> (i32, i32) {
    %c0_i32 = arith.constant 0 : i32
    %c0_i32_0 = arith.constant 0 : i32
    %c0_i32_1 = arith.constant 0 : i32
    return %c0_i32, %c0_i32_0 : i32, i32
  }
  func.func @transform_2(%arg0: i32) -> (i32, i32) {
    %c0_i32 = arith.constant 0 : i32
    %c0_i32_0 = arith.constant 0 : i32
    %c0_i32_1 = arith.constant 0 : i32
    return %c0_i32, %c0_i32_0 : i32, i32
  }
  func.func @transform_3(%arg0: i32) -> (i32, i32) {
    %c0_i32 = arith.constant 0 : i32
    %c0_i32_0 = arith.constant 0 : i32
    %c0_i32_1 = arith.constant 0 : i32
    return %c0_i32, %c0_i32_0 : i32, i32
  }
  func.func @transform_4(%arg0: i32) -> (i32, i32) {
    %c0_i32 = arith.constant 0 : i32
    %c0_i32_0 = arith.constant 0 : i32
    %c0_i32_1 = arith.constant 0 : i32
    return %c0_i32, %c0_i32_0 : i32, i32
  }
  func.func @transform_5(%arg0: i32) -> (i32, i32) {
    %c0_i32 = arith.constant 0 : i32
    %c0_i32_0 = arith.constant 0 : i32
    %c0_i32_1 = arith.constant 0 : i32
    return %c0_i32, %c0_i32_0 : i32, i32
  }
  func.func @transform_6(%arg0: i32) -> (i32, i32) {
    %c0_i32 = arith.constant 0 : i32
    %c0_i32_0 = arith.constant 0 : i32
    %c0_i32_1 = arith.constant 0 : i32
    return %c0_i32, %c0_i32_0 : i32, i32
  }
  func.func @transform_7(%arg0: i32) -> (i32, i32) {
    %c0_i32 = arith.constant 0 : i32
    %c0_i32_0 = arith.constant 0 : i32
    %c0_i32_1 = arith.constant 0 : i32
    return %c0_i32, %c0_i32_0 : i32, i32
  }
  func.func @transform_8(%arg0: i32) -> (i32, i32) {
    %c0_i32 = arith.constant 0 : i32
    %c0_i32_0 = arith.constant 0 : i32
    return %arg0, %c0_i32 : i32, i32
  }
}

</mosaic_0001>

<llo_original>
// kernel: tpu_custom_call.1
$region0: #{tpu_custom_call.1}
  #allocation0 [shape = 'u32[]', space=smem, size = 0x4, offset = 0x4, fixed_abs, tag = 'smem constant byte address 0x4 - core index']
  #allocation1 [shape = 'u32[72,128]{1,0:T(1,128)}', space=vmem, size = 0x9000, scoped, tag = 'internal scratch']
  %s0 = inlined_call_operand.hbm [shape: bf16[16,32], index: 0, kind: input, shape index: {}]
  %s1 = inlined_call_operand.hbm [shape: bf16[32,128], index: 1, kind: input, shape index: {}]
  %s2 = inlined_call_operand.vmem [shape: f32[1,128], index: 2, kind: input, shape index: {}]
  %s3 = inlined_call_operand.hbm [shape: bf16[128,128], index: 3, kind: input, shape index: {}]
  %s4 = inlined_call_operand.vmem [shape: f32[1,128], index: 4, kind: input, shape index: {}]
  %s5 = inlined_call_operand.hbm [shape: bf16[128,128], index: 5, kind: input, shape index: {}]
  %s6 = inlined_call_operand.vmem [shape: f32[1,128], index: 6, kind: input, shape index: {}]
  %s7 = inlined_call_operand.hbm [shape: bf16[128,128], index: 7, kind: input, shape index: {}]
  %s8 = inlined_call_operand.hbm [shape: f32[16,128], index: 8, kind: output, shape index: {}]
  %s9 = sld [smem:[#allocation0]]
  $region85: #{tpu_custom_call.1} parent=0
    _
  %s11 = ssub.s32 1, %s9
  %s12 = scalar_select 0, %s11, %s9
  $region1: #{tpu_custom_call.1} parent=0
    #allocation2 [shape = 'u8[4096]{0}', space=vmem, size = 0x1000, scoped, tag = 'input window, operand 0']
    #allocation3 [shape = 's32[2]{0}', space=sflag, size = 0x8, scoped, tag = 'scoped memory for tpu_custom_call.1']
    #allocation4 [shape = 's32[2]{0}', space=sflag, size = 0x8, scoped, tag = 'scoped memory for tpu_custom_call.1']
    #allocation5 [shape = 'u8[8192]{0}', space=vmem, size = 0x2000, scoped, tag = 'input window, operand 1, single buffered']
    #allocation6 [shape = 's32[1]{0}', space=sflag, size = 0x4, scoped, tag = 'scoped memory for tpu_custom_call.1']
    #allocation7 [shape = 'u8[32768]{0}', space=vmem, size = 0x8000, scoped, tag = 'input window, operand 3, single buffered']
    #allocation8 [shape = 'u8[32768]{0}', space=vmem, size = 0x8000, scoped, tag = 'input window, operand 5, single buffered']
    #allocation9 [shape = 's32[1]{0}', space=sflag, size = 0x4, scoped, tag = 'scoped memory for tpu_custom_call.1']
    #allocation10 [shape = 'u8[32768]{0}', space=vmem, size = 0x8000, scoped, tag = 'input window, operand 7, single buffered']
    #allocation11 [shape = 'u8[8192]{0}', space=vmem, size = 0x2000, scoped, tag = 'output window, operand 0']
    %13 = vsyncpa [#allocation3], 0
    %s14 = scalar_lea.sflag [#allocation3], 1
    %15 = vsyncpa %s14, 0
    %16 = vsyncpa [#allocation6], 0
    %17 = vsyncpa [#allocation9], 0
    %18 = vsyncpa [#allocation4], 0
    %s19 = scalar_lea.sflag [#allocation4], 1
    %20 = vsyncpa %s19, 0
    loop: start=0, step=1, limit=4
    $region2: #{tpu_custom_call.1} parent=1 // loop_pre_header
      _
    $region3: #{tpu_custom_call.1} parent=1 // loop_header
      %s22 = sphi 0, %s26
      %p23 = scmp.ge.s32.totalorder %s22, 4
      %s32 = sphi 0, %s34
      %s35 = sphi 0, %s32
      %s36 = sphi 0, %s35
      %s52 = sphi 0, %s36
      %s56 = sphi 0, %s56
      %s58 = sphi 0, %s56
      %s59 = sphi 0, %s58
      %s73 = sphi 0, %s59
      %s77 = sphi 0, %s77
      %s79 = sphi 0, %s77
      %s80 = sphi 0, %s79
      %s94 = sphi 0, %s80
      %s98 = sphi 0, %s98
      %s100 = sphi 0, %s98
      %s101 = sphi 0, %s100
      %s115 = sphi 0, %s101
      %s119 = sphi 0, %s119
      %s121 = sphi 0, %s119
      %s122 = sphi 0, %s121
      %s136 = sphi 0, %s122
      %s140 = sphi 0, %s140
      %s142 = sphi 0, %s140
      %s143 = sphi 0, %s142
      %s157 = sphi 0, %s143
      %s161 = sphi 0, %s161
      %s163 = sphi 0, %s161
      %s164 = sphi 0, %s163
      %s178 = sphi 0, %s164
      %s182 = sphi 0, %s182
      %s184 = sphi 0, %s182
      %s185 = sphi 0, %s184
      %s199 = sphi 0, %s185
      %s205 = sphi 0, %s207
      %s208 = sphi 0, %s205
      %s209 = sphi 0, %s208
      %s225 = sphi 0, %s209
    $region4: #{tpu_custom_call.1} parent=1 // loop_header_branch
      %25 = sbr.rel (%p23) target = $region8
    $region5: #{tpu_custom_call.1} parent=1 // loop_body
      %s27 = ssub.s32 %s22, 1
      %s28 = ssub.s32 %s22, 2
      %s29 = sadd.s32 %s22, 1
      %s30 = ssub.s32 %s22, %s29
      %p31 = scmp.eq.s32.totalorder %s30, 0
      %s33 = sadd.s32 %s32, 1
      %s34 = scalar_select %p31, %s32, %s33
      %p37 = pneg %p31
      %p38 = scmp.eq.s32.totalorder %s22, 1
      %p39 = por %p37, %p38
      %p40 = scmp.ne.s32.totalorder %s32, %s35
      %p41 = scmp.eq.s32.totalorder %s22, 0
      %p42 = por %p40, %p41
      %p43 = scmp.ne.s32.totalorder %s32, %s35
      %p44 = scmp.eq.s32.totalorder %s27, 1
      %p45 = por %p43, %p44
      %p46 = scmp.ne.s32.totalorder %s35, %s36
      %p47 = scmp.eq.s32.totalorder %s27, 0
      %p48 = por %p46, %p47
      %p49 = scmp.ne.s32.totalorder %s35, %s36
      %p50 = scmp.eq.s32.totalorder %s28, 1
      %p51 = por %p49, %p50
      %p53 = scmp.ne.s32.totalorder %s36, %s52
      %p54 = scmp.eq.s32.totalorder %s28, 0
      %p55 = por %p53, %p54
      %s57 = sadd.s32 %s56, 1
      %p60 = scmp.eq.s32.totalorder %s22, 1
      %p61 = scmp.ne.s32.totalorder %s56, %s58
      %p62 = scmp.eq.s32.totalorder %s22, 0
      %p63 = por %p61, %p62
      %p64 = scmp.ne.s32.totalorder %s56, %s58
      %p65 = scmp.eq.s32.totalorder %s27, 1
      %p66 = por %p64, %p65
      %p67 = scmp.ne.s32.totalorder %s58, %s59
      %p68 = scmp.eq.s32.totalorder %s27, 0
      %p69 = por %p67, %p68
      %p70 = scmp.ne.s32.totalorder %s58, %s59
      %p71 = scmp.eq.s32.totalorder %s28, 1
      %p72 = por %p70, %p71
      %p74 = scmp.ne.s32.totalorder %s59, %s73
      %p75 = scmp.eq.s32.totalorder %s28, 0
      %p76 = por %p74, %p75
      %s78 = sadd.s32 %s77, 1
      %p81 = scmp.eq.s32.totalorder %s22, 1
      %p82 = scmp.ne.s32.totalorder %s77, %s79
      %p83 = scmp.eq.s32.totalorder %s22, 0
      %p84 = por %p82, %p83
      %p85 = scmp.ne.s32.totalorder %s77, %s79
      %p86 = scmp.eq.s32.totalorder %s27, 1
      %p87 = por %p85, %p86
      %p88 = scmp.ne.s32.totalorder %s79, %s80
      %p89 = scmp.eq.s32.totalorder %s27, 0
      %p90 = por %p88, %p89
      %p91 = scmp.ne.s32.totalorder %s79, %s80
      %p92 = scmp.eq.s32.totalorder %s28, 1
      %p93 = por %p91, %p92
      %p95 = scmp.ne.s32.totalorder %s80, %s94
      %p96 = scmp.eq.s32.totalorder %s28, 0
      %p97 = por %p95, %p96
      %s99 = sadd.s32 %s98, 1
      %p102 = scmp.eq.s32.totalorder %s22, 1
      %p103 = scmp.ne.s32.totalorder %s98, %s100
      %p104 = scmp.eq.s32.totalorder %s22, 0
      %p105 = por %p103, %p104
      %p106 = scmp.ne.s32.totalorder %s98, %s100
      %p107 = scmp.eq.s32.totalorder %s27, 1
      %p108 = por %p106, %p107
      %p109 = scmp.ne.s32.totalorder %s100, %s101
      %p110 = scmp.eq.s32.totalorder %s27, 0
      %p111 = por %p109, %p110
      %p112 = scmp.ne.s32.totalorder %s100, %s101
      %p113 = scmp.eq.s32.totalorder %s28, 1
      %p114 = por %p112, %p113
      %p116 = scmp.ne.s32.totalorder %s101, %s115
      %p117 = scmp.eq.s32.totalorder %s28, 0
      %p118 = por %p116, %p117
      %s120 = sadd.s32 %s119, 1
      %p123 = scmp.eq.s32.totalorder %s22, 1
      %p124 = scmp.ne.s32.totalorder %s119, %s121
      %p125 = scmp.eq.s32.totalorder %s22, 0
      %p126 = por %p124, %p125
      %p127 = scmp.ne.s32.totalorder %s119, %s121
      %p128 = scmp.eq.s32.totalorder %s27, 1
      %p129 = por %p127, %p128
      %p130 = scmp.ne.s32.totalorder %s121, %s122
      %p131 = scmp.eq.s32.totalorder %s27, 0
      %p132 = por %p130, %p131
      %p133 = scmp.ne.s32.totalorder %s121, %s122
      %p134 = scmp.eq.s32.totalorder %s28, 1
      %p135 = por %p133, %p134
      %p137 = scmp.ne.s32.totalorder %s122, %s136
      %p138 = scmp.eq.s32.totalorder %s28, 0
      %p139 = por %p137, %p138
      %s141 = sadd.s32 %s140, 1
      %p144 = scmp.eq.s32.totalorder %s22, 1
      %p145 = scmp.ne.s32.totalorder %s140, %s142
      %p146 = scmp.eq.s32.totalorder %s22, 0
      %p147 = por %p145, %p146
      %p148 = scmp.ne.s32.totalorder %s140, %s142
      %p149 = scmp.eq.s32.totalorder %s27, 1
      %p150 = por %p148, %p149
      %p151 = scmp.ne.s32.totalorder %s142, %s143
      %p152 = scmp.eq.s32.totalorder %s27, 0
      %p153 = por %p151, %p152
      %p154 = scmp.ne.s32.totalorder %s142, %s143
      %p155 = scmp.eq.s32.totalorder %s28, 1
      %p156 = por %p154, %p155
      %p158 = scmp.ne.s32.totalorder %s143, %s157
      %p159 = scmp.eq.s32.totalorder %s28, 0
      %p160 = por %p158, %p159
      %s162 = sadd.s32 %s161, 1
      %p165 = scmp.eq.s32.totalorder %s22, 1
      %p166 = scmp.ne.s32.totalorder %s161, %s163
      %p167 = scmp.eq.s32.totalorder %s22, 0
      %p168 = por %p166, %p167
      %p169 = scmp.ne.s32.totalorder %s161, %s163
      %p170 = scmp.eq.s32.totalorder %s27, 1
      %p171 = por %p169, %p170
      %p172 = scmp.ne.s32.totalorder %s163, %s164
      %p173 = scmp.eq.s32.totalorder %s27, 0
      %p174 = por %p172, %p173
      %p175 = scmp.ne.s32.totalorder %s163, %s164
      %p176 = scmp.eq.s32.totalorder %s28, 1
      %p177 = por %p175, %p176
      %p179 = scmp.ne.s32.totalorder %s164, %s178
      %p180 = scmp.eq.s32.totalorder %s28, 0
      %p181 = por %p179, %p180
      %s183 = sadd.s32 %s182, 1
      %p186 = scmp.eq.s32.totalorder %s22, 1
      %p187 = scmp.ne.s32.totalorder %s182, %s184
      %p188 = scmp.eq.s32.totalorder %s22, 0
      %p189 = por %p187, %p188
      %p190 = scmp.ne.s32.totalorder %s182, %s184
      %p191 = scmp.eq.s32.totalorder %s27, 1
      %p192 = por %p190, %p191
      %p193 = scmp.ne.s32.totalorder %s184, %s185
      %p194 = scmp.eq.s32.totalorder %s27, 0
      %p195 = por %p193, %p194
      %p196 = scmp.ne.s32.totalorder %s184, %s185
      %p197 = scmp.eq.s32.totalorder %s28, 1
      %p198 = por %p196, %p197
      %p200 = scmp.ne.s32.totalorder %s185, %s199
      %p201 = scmp.eq.s32.totalorder %s28, 0
      %p202 = por %p200, %p201
      %s203 = ssub.s32 %s22, %s29
      %p204 = scmp.eq.s32.totalorder %s203, 0
      %s206 = sadd.s32 %s205, 1
      %s207 = scalar_select %p204, %s205, %s206
      %p210 = pneg %p204
      %p211 = scmp.eq.s32.totalorder %s22, 1
      %p212 = por %p210, %p211
      %p213 = scmp.ne.s32.totalorder %s205, %s208
      %p214 = scmp.eq.s32.totalorder %s22, 0
      %p215 = por %p213, %p214
      %p216 = scmp.ne.s32.totalorder %s205, %s208
      %p217 = scmp.eq.s32.totalorder %s27, 1
      %p218 = por %p216, %p217
      %p219 = scmp.ne.s32.totalorder %s208, %s209
      %p220 = scmp.eq.s32.totalorder %s27, 0
      %p221 = por %p219, %p220
      %p222 = scmp.ne.s32.totalorder %s208, %s209
      %p223 = scmp.eq.s32.totalorder %s28, 1
      %p224 = por %p222, %p223
      %p226 = scmp.ne.s32.totalorder %s209, %s225
      %p227 = scmp.eq.s32.totalorder %s28, 0
      %p228 = por %p226, %p227
      %p229 = scmp.le.s32.totalorder 1, %s22
      %p230 = scmp.lt.s32.totalorder %s22, 3
      %p231 = pnand %p229, %p230
      %p232 = pneg %p231
      // Predicated region
      $region9: #{tpu_custom_call.1} parent=5 // pred_check
        _
      $region10: #{tpu_custom_call.1} parent=5 // pred_check_branch
        %234 = sbr.rel (%p231) target = $region12
      $region11: #{tpu_custom_call.1} parent=5 // pred_region
        %s235 = ssub.s32 %s22, 1
        // Predicated region
        $region13: #{tpu_custom_call.1} parent=11 // pred_check
          %p236 = pneg %p69
        $region14: #{tpu_custom_call.1} parent=11 // pred_check_branch
          %238 = sbr.rel (%p236) target = $region16
        $region15: #{tpu_custom_call.1} parent=11 // pred_region
          %240 = vsyncadd [#allocation6], 0
          %s241 = sshll.u32 %s1, 4
          %s242 = int_to_ptr.hbm [resolvable:$true] %s241
          %s243 = sshll.u32 [#allocation5], 4
          %s244 = int_to_ptr.vmem [resolvable:$true] %s243
          %249 = dma.hbm_to_vmem [thread:$0]  %s242, 256, %s244, [#allocation6], 64, 64, 4
        $region16: #{tpu_custom_call.1} parent=11 // pred_fallthru
          _
        // Predicated region
        $region17: #{tpu_custom_call.1} parent=11 // pred_check
          %p250 = pneg %p90
        $region18: #{tpu_custom_call.1} parent=11 // pred_check_branch
          %252 = sbr.rel (%p250) target = $region20
        $region19: #{tpu_custom_call.1} parent=11 // pred_region
          _
        $region20: #{tpu_custom_call.1} parent=11 // pred_fallthru
          _
        // Predicated region
        $region21: #{tpu_custom_call.1} parent=11 // pred_check
          %p253 = pneg %p111
        $region22: #{tpu_custom_call.1} parent=11 // pred_check_branch
          %255 = sbr.rel (%p253) target = $region24
        $region23: #{tpu_custom_call.1} parent=11 // pred_region
          %257 = vsyncadd [#allocation6], 0
          %s258 = sshll.u32 %s3, 4
          %s259 = int_to_ptr.hbm [resolvable:$true] %s258
          %s260 = sshll.u32 [#allocation7], 4
          %s261 = int_to_ptr.vmem [resolvable:$true] %s260
          %266 = dma.hbm_to_vmem [thread:$0]  %s259, 1024, %s261, [#allocation6], 64, 64, 4
        $region24: #{tpu_custom_call.1} parent=11 // pred_fallthru
          _
        // Predicated region
        $region25: #{tpu_custom_call.1} parent=11 // pred_check
          %p267 = pneg %p132
        $region26: #{tpu_custom_call.1} parent=11 // pred_check_branch
          %269 = sbr.rel (%p267) target = $region28
        $region27: #{tpu_custom_call.1} parent=11 // pred_region
          _
        $region28: #{tpu_custom_call.1} parent=11 // pred_fallthru
          _
        // Predicated region
        $region29: #{tpu_custom_call.1} parent=11 // pred_check
          %p270 = pneg %p153
        $region30: #{tpu_custom_call.1} parent=11 // pred_check_branch
          %272 = sbr.rel (%p270) target = $region32
        $region31: #{tpu_custom_call.1} parent=11 // pred_region
          %274 = vsyncadd [#allocation9], 0
          %s275 = sshll.u32 %s5, 4
          %s276 = int_to_ptr.hbm [resolvable:$true] %s275
          %s277 = sshll.u32 [#allocation8], 4
          %s278 = int_to_ptr.vmem [resolvable:$true] %s277
          %283 = dma.hbm_to_vmem [thread:$0]  %s276, 1024, %s278, [#allocation9], 64, 64, 4
        $region32: #{tpu_custom_call.1} parent=11 // pred_fallthru
          _
        // Predicated region
        $region33: #{tpu_custom_call.1} parent=11 // pred_check
          %p284 = pneg %p174
        $region34: #{tpu_custom_call.1} parent=11 // pred_check_branch
          %286 = sbr.rel (%p284) target = $region36
        $region35: #{tpu_custom_call.1} parent=11 // pred_region
          _
        $region36: #{tpu_custom_call.1} parent=11 // pred_fallthru
          _
        // Predicated region
        $region37: #{tpu_custom_call.1} parent=11 // pred_check
          %p287 = pneg %p195
        $region38: #{tpu_custom_call.1} parent=11 // pred_check_branch
          %289 = sbr.rel (%p287) target = $region40
        $region39: #{tpu_custom_call.1} parent=11 // pred_region
          %291 = vsyncadd [#allocation9], 0
          %s292 = sshll.u32 %s7, 4
          %s293 = int_to_ptr.hbm [resolvable:$true] %s292
          %s294 = sshll.u32 [#allocation10], 4
          %s295 = int_to_ptr.vmem [resolvable:$true] %s294
          %300 = dma.hbm_to_vmem [thread:$0]  %s293, 1024, %s295, [#allocation9], 64, 64, 4
        $region40: #{tpu_custom_call.1} parent=11 // pred_fallthru
          _
      $region12: #{tpu_custom_call.1} parent=5 // pred_fallthru
        _
      %p301 = scmp.lt.s32.totalorder %s22, 2
      // Predicated region
      $region41: #{tpu_custom_call.1} parent=5 // pred_check
        %p302 = pneg %p301
      $region42: #{tpu_custom_call.1} parent=5 // pred_check_branch
        %304 = sbr.rel (%p302) target = $region44
      $region43: #{tpu_custom_call.1} parent=5 // pred_region
        // Predicated region
        $region45: #{tpu_custom_call.1} parent=43 // pred_check
          %p305 = pneg %p42
        $region46: #{tpu_custom_call.1} parent=43 // pred_check_branch
          %307 = sbr.rel (%p305) target = $region48
        $region47: #{tpu_custom_call.1} parent=43 // pred_region
          %s308 = sand.u32 %s32, 1
          %s309 = scalar_lea.sflag [#allocation3], %s308
          %s310 = sand.u32 %s32, 1
          %s311 = smul.addr %s310, 4
          %s312 = scalar_lea.vmem [#allocation2], %s311
          %314 = vsyncadd %s309, 0
          %s315 = smul.addr %s22, 4
          %s316 = scalar_lea.hbm %s0, %s315
          %s318 = sshll.u32 %s316, 4
          %s319 = int_to_ptr.hbm [resolvable:$true] %s318
          %s320 = sshll.u32 %s312, 4
          %s321 = int_to_ptr.vmem [resolvable:$true] %s320
          %323 = dma.hbm_to_vmem [thread:$0]  %s319, 64, %s321, %s309
        $region48: #{tpu_custom_call.1} parent=43 // pred_fallthru
          _
      $region44: #{tpu_custom_call.1} parent=5 // pred_fallthru
        _
      %p324 = scmp.le.s32.totalorder 1, %s22
      %p325 = scmp.lt.s32.totalorder %s22, 3
      %p326 = pnand %p324, %p325
      %p327 = pneg %p326
      // Predicated region
      $region49: #{tpu_custom_call.1} parent=5 // pred_check
        _
      $region50: #{tpu_custom_call.1} parent=5 // pred_check_branch
        %329 = sbr.rel (%p326) target = $region52
      $region51: #{tpu_custom_call.1} parent=5 // pred_region
        %s330 = ssub.s32 %s22, 1
        %s331 = sand.u32 %s35, 1
        %s332 = scalar_lea.sflag [#allocation3], %s331
        %s333 = sand.u32 %s35, 1
        %s334 = smul.addr %s333, 4
        %s335 = scalar_lea.vmem [#allocation2], %s334
        // Predicated region
        $region53: #{tpu_custom_call.1} parent=51 // pred_check
          %p336 = pneg %p48
        $region54: #{tpu_custom_call.1} parent=51 // pred_check_branch
          %338 = sbr.rel (%p336) target = $region56
        $region55: #{tpu_custom_call.1} parent=51 // pred_region
          %340 = dma.done %s332, 64
        $region56: #{tpu_custom_call.1} parent=51 // pred_fallthru
          _
        // Predicated region
        $region57: #{tpu_custom_call.1} parent=51 // pred_check
          %p341 = pneg %p69
        $region58: #{tpu_custom_call.1} parent=51 // pred_check_branch
          %343 = sbr.rel (%p341) target = $region60
        $region59: #{tpu_custom_call.1} parent=51 // pred_region
          %345 = dma.done [#allocation6], 256
        $region60: #{tpu_custom_call.1} parent=51 // pred_fallthru
          _
        // Predicated region
        $region61: #{tpu_custom_call.1} parent=51 // pred_check
          %p346 = pneg %p111
        $region62: #{tpu_custom_call.1} parent=51 // pred_check_branch
          %348 = sbr.rel (%p346) target = $region64
        $region63: #{tpu_custom_call.1} parent=51 // pred_region
          %350 = dma.done [#allocation6], 1024
        $region64: #{tpu_custom_call.1} parent=51 // pred_fallthru
          _
        // Predicated region
        $region65: #{tpu_custom_call.1} parent=51 // pred_check
          %p351 = pneg %p153
        $region66: #{tpu_custom_call.1} parent=51 // pred_check_branch
          %353 = sbr.rel (%p351) target = $region68
        $region67: #{tpu_custom_call.1} parent=51 // pred_region
          %355 = dma.done [#allocation9], 1024
        $region68: #{tpu_custom_call.1} parent=51 // pred_fallthru
          _
        // Predicated region
        $region69: #{tpu_custom_call.1} parent=51 // pred_check
          %p356 = pneg %p195
        $region70: #{tpu_custom_call.1} parent=51 // pred_check_branch
          %358 = sbr.rel (%p356) target = $region72
        $region71: #{tpu_custom_call.1} parent=51 // pred_region
          %360 = dma.done [#allocation9], 1024
        $region72: #{tpu_custom_call.1} parent=51 // pred_fallthru
          _
        %s361 = sand.u32 %s35, 1
        %s362 = scalar_lea.sflag [#allocation3], %s361
        %s363 = sand.u32 %s35, 1
        %s364 = smul.addr %s363, 4
        %s365 = scalar_lea.vmem [#allocation2], %s364
        %p366 = pneg %p48
        %p367 = pneg %p45
        %p368 = pneg %p69
        %p369 = pneg %p66
        %p370 = pneg %p90
        %p371 = pneg %p87
        %p372 = pneg %p111
        %p373 = pneg %p108
        %p374 = pneg %p132
        %p375 = pneg %p129
        %p376 = pneg %p153
        %p377 = pneg %p150
        %p378 = pneg %p174
        %p379 = pneg %p171
        %p380 = pneg %p195
        %p381 = pneg %p192
        %p382 = pneg %p221
        %p383 = pneg %p218
        %s384 = sand.u32 %s208, 1
        %s385 = scalar_lea.sflag [#allocation4], %s384
        %s386 = sand.u32 %s208, 1
        %s387 = smul.addr %s386, 8
        %s388 = scalar_lea.vmem [#allocation11], %s387
        %v390 = vld [vmem:[%s335] sm:$0xf]
        %v391 = vld [vmem:[#allocation5] sm:$0xf]
        %v392 = vld [vmem:[#allocation5 + $0x4] sm:$0xf]
        %v393 = vld [vmem:[#allocation5 + $0x8] sm:$0xf]
        %v394 = vld [vmem:[#allocation5 + $0xc] sm:$0xf]
        %v395 = vld [vmem:[%s2] sm:$0x1]
        %v397 = vperm.slane %v395, 0
        %v403 = vunpack.c.l.b16 %v391
        %v404 = vunpack.c.l.b16 %v392
        %v405 = vunpack.c.l.b16 %v393
        %v406 = vunpack.c.l.b16 %v394
        %v407 = vpack.c.b16 %v404, %v403
        %v408 = vpack.c.b16 %v406, %v405
        %vm411 = vcmask 261120
        %v413 = vsel %vm411, %v390, 0
        %415 = vmatpush.bf16.msra.mxu0 0
        %416 = vmatpush.bf16.msra.mxu0 0
        %417 = vmatpush.bf16.msra.mxu0 0
        %418 = vmatpush.bf16.msra.mxu0 0
        %419 = vmatpush.bf16.msra.mxu0 0
        %420 = vmatpush.bf16.msra.mxu0 0
        %421 = vmatpush.bf16.msra.mxu0 %v408
        %422 = vmatpush.bf16.msra.mxu0 %v407
        %423 = vmatmul.bf16.gmra.mxu0 %v413
        %v424 = vpop.f32.mrf.mxu0
        %v425 = vadd.f32 %v397, %v424
        %v426 = vpop.f32.mrf.mxu0
        %427 = vdwg.mxu0
        %v428 = vmax.f32 %v425, -1.0
        %v429 = vmin.f32 %v428, 1.0
        %v430 = vpack.c.bf16 %v429, %v429
        %v431 = vld [vmem:[#allocation7] sm:$0xf]
        %v432 = vld [vmem:[#allocation7 + $0x4] sm:$0xf]
        %v433 = vld [vmem:[#allocation7 + $0x8] sm:$0xf]
        %v434 = vld [vmem:[#allocation7 + $0xc] sm:$0xf]
        %v435 = vld [vmem:[#allocation7 + $0x10] sm:$0xf]
        %v436 = vld [vmem:[#allocation7 + $0x14] sm:$0xf]
        %v437 = vld [vmem:[#allocation7 + $0x18] sm:$0xf]
        %v438 = vld [vmem:[#allocation7 + $0x1c] sm:$0xf]
        %v439 = vld [vmem:[#allocation7 + $0x20] sm:$0xf]
        %v440 = vld [vmem:[#allocation7 + $0x24] sm:$0xf]
        %v441 = vld [vmem:[#allocation7 + $0x28] sm:$0xf]
        %v442 = vld [vmem:[#allocation7 + $0x2c] sm:$0xf]
        %v443 = vld [vmem:[#allocation7 + $0x30] sm:$0xf]
        %v444 = vld [vmem:[#allocation7 + $0x34] sm:$0xf]
        %v445 = vld [vmem:[#allocation7 + $0x38] sm:$0xf]
        %v446 = vld [vmem:[#allocation7 + $0x3c] sm:$0xf]
        %v447 = vld [vmem:[%s4] sm:$0x1]
        %v449 = vperm.slane %v447, 0
        %v467 = vunpack.c.l.b16 %v431
        %v468 = vunpack.c.l.b16 %v432
        %v469 = vunpack.c.l.b16 %v433
        %v470 = vunpack.c.l.b16 %v434
        %v471 = vunpack.c.l.b16 %v435
        %v472 = vunpack.c.l.b16 %v436
        %v473 = vunpack.c.l.b16 %v437
        %v474 = vunpack.c.l.b16 %v438
        %v475 = vunpack.c.l.b16 %v439
        %v476 = vunpack.c.l.b16 %v440
        %v477 = vunpack.c.l.b16 %v441
        %v478 = vunpack.c.l.b16 %v442
        %v479 = vunpack.c.l.b16 %v443
        %v480 = vunpack.c.l.b16 %v444
        %v481 = vunpack.c.l.b16 %v445
        %v482 = vunpack.c.l.b16 %v446
        %v483 = vpack.c.b16 %v468, %v467
        %v484 = vpack.c.b16 %v470, %v469
        %v485 = vpack.c.b16 %v472, %v471
        %v486 = vpack.c.b16 %v474, %v473
        %v487 = vpack.c.b16 %v476, %v475
        %v488 = vpack.c.b16 %v478, %v477
        %v489 = vpack.c.b16 %v480, %v479
        %v490 = vpack.c.b16 %v482, %v481
        %499 = vmatpush.bf16.msra.mxu0 %v490
        %500 = vmatpush.bf16.msra.mxu0 %v489
        %501 = vmatpush.bf16.msra.mxu0 %v488
        %502 = vmatpush.bf16.msra.mxu0 %v487
        %503 = vmatpush.bf16.msra.mxu0 %v486
        %504 = vmatpush.bf16.msra.mxu0 %v485
        %505 = vmatpush.bf16.msra.mxu0 %v484
        %506 = vmatpush.bf16.msra.mxu0 %v483
        %507 = vmatmul.bf16.gmra.mxu0 %v430
        %v508 = vpop.f32.mrf.mxu0
        %v509 = vadd.f32 %v449, %v508
        %v510 = vpop.f32.mrf.mxu0
        %511 = vdwg.mxu0
        %v512 = vmax.f32 %v509, -1.0
        %v513 = vmin.f32 %v512, 1.0
        %v514 = vpack.c.bf16 %v513, %v513
        %v515 = vld [vmem:[#allocation8] sm:$0xf]
        %v516 = vld [vmem:[#allocation8 + $0x4] sm:$0xf]
        %v517 = vld [vmem:[#allocation8 + $0x8] sm:$0xf]
        %v518 = vld [vmem:[#allocation8 + $0xc] sm:$0xf]
        %v519 = vld [vmem:[#allocation8 + $0x10] sm:$0xf]
        %v520 = vld [vmem:[#allocation8 + $0x14] sm:$0xf]
        %v521 = vld [vmem:[#allocation8 + $0x18] sm:$0xf]
        %v522 = vld [vmem:[#allocation8 + $0x1c] sm:$0xf]
        %v523 = vld [vmem:[#allocation8 + $0x20] sm:$0xf]
        %v524 = vld [vmem:[#allocation8 + $0x24] sm:$0xf]
        %v525 = vld [vmem:[#allocation8 + $0x28] sm:$0xf]
        %v526 = vld [vmem:[#allocation8 + $0x2c] sm:$0xf]
        %v527 = vld [vmem:[#allocation8 + $0x30] sm:$0xf]
        %v528 = vld [vmem:[#allocation8 + $0x34] sm:$0xf]
        %v529 = vld [vmem:[#allocation8 + $0x38] sm:$0xf]
        %v530 = vld [vmem:[#allocation8 + $0x3c] sm:$0xf]
        %v531 = vld [vmem:[%s6] sm:$0x1]
        %v533 = vperm.slane %v531, 0
        %v551 = vunpack.c.l.b16 %v515
        %v552 = vunpack.c.l.b16 %v516
        %v553 = vunpack.c.l.b16 %v517
        %v554 = vunpack.c.l.b16 %v518
        %v555 = vunpack.c.l.b16 %v519
        %v556 = vunpack.c.l.b16 %v520
        %v557 = vunpack.c.l.b16 %v521
        %v558 = vunpack.c.l.b16 %v522
        %v559 = vunpack.c.l.b16 %v523
        %v560 = vunpack.c.l.b16 %v524
        %v561 = vunpack.c.l.b16 %v525
        %v562 = vunpack.c.l.b16 %v526
        %v563 = vunpack.c.l.b16 %v527
        %v564 = vunpack.c.l.b16 %v528
        %v565 = vunpack.c.l.b16 %v529
        %v566 = vunpack.c.l.b16 %v530
        %v567 = vpack.c.b16 %v552, %v551
        %v568 = vpack.c.b16 %v554, %v553
        %v569 = vpack.c.b16 %v556, %v555
        %v570 = vpack.c.b16 %v558, %v557
        %v571 = vpack.c.b16 %v560, %v559
        %v572 = vpack.c.b16 %v562, %v561
        %v573 = vpack.c.b16 %v564, %v563
        %v574 = vpack.c.b16 %v566, %v565
        %583 = vmatpush.bf16.msra.mxu0 %v574
        %584 = vmatpush.bf16.msra.mxu0 %v573
        %585 = vmatpush.bf16.msra.mxu0 %v572
        %586 = vmatpush.bf16.msra.mxu0 %v571
        %587 = vmatpush.bf16.msra.mxu0 %v570
        %588 = vmatpush.bf16.msra.mxu0 %v569
        %589 = vmatpush.bf16.msra.mxu0 %v568
        %590 = vmatpush.bf16.msra.mxu0 %v567
        %591 = vmatmul.bf16.gmra.mxu0 %v514
        %v592 = vpop.f32.mrf.mxu0
        %v593 = vadd.f32 %v533, %v592
        %v594 = vpop.f32.mrf.mxu0
        %595 = vdwg.mxu0
        %v596 = vmax.f32 %v593, -1.0
        %v597 = vmin.f32 %v596, 1.0
        %v598 = vpack.c.bf16 %v597, %v597
        %v599 = vld [vmem:[#allocation10] sm:$0xf]
        %v600 = vld [vmem:[#allocation10 + $0x4] sm:$0xf]
        %v601 = vld [vmem:[#allocation10 + $0x8] sm:$0xf]
        %v602 = vld [vmem:[#allocation10 + $0xc] sm:$0xf]
        %v603 = vld [vmem:[#allocation10 + $0x10] sm:$0xf]
        %v604 = vld [vmem:[#allocation10 + $0x14] sm:$0xf]
        %v605 = vld [vmem:[#allocation10 + $0x18] sm:$0xf]
        %v606 = vld [vmem:[#allocation10 + $0x1c] sm:$0xf]
        %v607 = vld [vmem:[#allocation10 + $0x20] sm:$0xf]
        %v608 = vld [vmem:[#allocation10 + $0x24] sm:$0xf]
        %v609 = vld [vmem:[#allocation10 + $0x28] sm:$0xf]
        %v610 = vld [vmem:[#allocation10 + $0x2c] sm:$0xf]
        %v611 = vld [vmem:[#allocation10 + $0x30] sm:$0xf]
        %v612 = vld [vmem:[#allocation10 + $0x34] sm:$0xf]
        %v613 = vld [vmem:[#allocation10 + $0x38] sm:$0xf]
        %v614 = vld [vmem:[#allocation10 + $0x3c] sm:$0xf]
        %v631 = vunpack.c.l.b16 %v599
        %v632 = vunpack.c.l.b16 %v600
        %v633 = vunpack.c.l.b16 %v601
        %v634 = vunpack.c.l.b16 %v602
        %v635 = vunpack.c.l.b16 %v603
        %v636 = vunpack.c.l.b16 %v604
        %v637 = vunpack.c.l.b16 %v605
        %v638 = vunpack.c.l.b16 %v606
        %v639 = vunpack.c.l.b16 %v607
        %v640 = vunpack.c.l.b16 %v608
        %v641 = vunpack.c.l.b16 %v609
        %v642 = vunpack.c.l.b16 %v610
        %v643 = vunpack.c.l.b16 %v611
        %v644 = vunpack.c.l.b16 %v612
        %v645 = vunpack.c.l.b16 %v613
        %v646 = vunpack.c.l.b16 %v614
        %v647 = vpack.c.b16 %v632, %v631
        %v648 = vpack.c.b16 %v634, %v633
        %v649 = vpack.c.b16 %v636, %v635
        %v650 = vpack.c.b16 %v638, %v637
        %v651 = vpack.c.b16 %v640, %v639
        %v652 = vpack.c.b16 %v642, %v641
        %v653 = vpack.c.b16 %v644, %v643
        %v654 = vpack.c.b16 %v646, %v645
        %663 = vmatpush.bf16.msra.mxu0 %v654
        %664 = vmatpush.bf16.msra.mxu0 %v653
        %665 = vmatpush.bf16.msra.mxu0 %v652
        %666 = vmatpush.bf16.msra.mxu0 %v651
        %667 = vmatpush.bf16.msra.mxu0 %v650
        %668 = vmatpush.bf16.msra.mxu0 %v649
        %669 = vmatpush.bf16.msra.mxu0 %v648
        %670 = vmatpush.bf16.msra.mxu0 %v647
        %671 = vmatmul.bf16.gmra.mxu0 %v598
        %v672 = vpop.f32.mrf.mxu0
        %v673 = vadd.f32 0.0, %v672
        %v674 = vpop.f32.mrf.mxu0
        %675 = vdwg.mxu0
        %v676 = vlaneseq
        %v677 = vand.u32 %v676, 127
        %vm678 = vcmp.lt.s32.totalorder %v677, 10
        %v679 = vsel %vm678, %v673, -1e+30
        %680 = vmax.xlane.f32.xlu0 %v679
        %v681 = vpop.xlane.xlu0 %680
        %v682 = vsub.f32 %v679, %v681
        %v683 = vmul.f32 %v682, 1.442695
        %v684 = vpow.pop %v683
        %685 = vadd.xlane.f32.xlu0 %v684
        %v686 = vpop.xlane.xlu0 %685
        %v687 = vlog2.pop %v686
        %v688 = vmul.f32 %v687, 0.6931472
        %v689 = vsub.f32 %v682, %v688
        %690 = vst [vmem:[%s388] sm:$0xff] %v689
        %s691 = sand.u32 %s208, 1
        %s692 = scalar_lea.sflag [#allocation4], %s691
        %s693 = sand.u32 %s208, 1
        %s694 = smul.addr %s693, 8
        %s695 = scalar_lea.vmem [#allocation11], %s694
        // Predicated region
        $region73: #{tpu_custom_call.1} parent=51 // pred_check
          %p696 = pneg %p218
        $region74: #{tpu_custom_call.1} parent=51 // pred_check_branch
          %698 = sbr.rel (%p696) target = $region76
        $region75: #{tpu_custom_call.1} parent=51 // pred_region
          %700 = vsyncadd %s692, 0
          %s701 = smul.addr %s27, 8
          %s702 = scalar_lea.hbm %s8, %s701
          %s704 = sshll.u32 %s695, 4
          %s705 = int_to_ptr.vmem [resolvable:$true] %s704
          %s706 = sshll.u32 %s702, 4
          %s707 = int_to_ptr.hbm [resolvable:$true] %s706
          %709 = dma.vmem_to_hbm [thread:$0]  %s705, 128, %s707, %s692
        $region76: #{tpu_custom_call.1} parent=51 // pred_fallthru
          _
      $region52: #{tpu_custom_call.1} parent=5 // pred_fallthru
        _
      %p710 = scmp.le.s32.totalorder 2, %s22
      // Predicated region
      $region77: #{tpu_custom_call.1} parent=5 // pred_check
        %p711 = pneg %p710
      $region78: #{tpu_custom_call.1} parent=5 // pred_check_branch
        %713 = sbr.rel (%p711) target = $region80
      $region79: #{tpu_custom_call.1} parent=5 // pred_region
        %s714 = ssub.s32 %s22, 2
        // Predicated region
        $region81: #{tpu_custom_call.1} parent=79 // pred_check
          %p715 = pneg %p224
        $region82: #{tpu_custom_call.1} parent=79 // pred_check_branch
          %717 = sbr.rel (%p715) target = $region84
        $region83: #{tpu_custom_call.1} parent=79 // pred_region
          %s718 = sand.u32 %s209, 1
          %s719 = scalar_lea.sflag [#allocation4], %s718
          %s720 = sand.u32 %s209, 1
          %s721 = smul.addr %s720, 8
          %s722 = scalar_lea.vmem [#allocation11], %s721
          %724 = dma.done %s719, 128
        $region84: #{tpu_custom_call.1} parent=79 // pred_fallthru
          _
      $region80: #{tpu_custom_call.1} parent=5 // pred_fallthru
        _
    $region6: #{tpu_custom_call.1} parent=1 // loop_footer
      %s26 = sadd.s32 1, %s22
    $region7: #{tpu_custom_call.1} parent=1 // loop_footer_branch
      %21 = sbr.rel target = $region3
    $region8: #{tpu_custom_call.1} parent=1 // loop_exit
      _
    %725 = vsyncpa [#allocation3], 1
    %s726 = scalar_lea.sflag [#allocation3], 1
    %727 = vsyncpa %s726, 1
    %728 = vsyncpa [#allocation6], 1
    %729 = vsyncpa [#allocation9], 1
    %730 = vsyncpa [#allocation4], 1
    %s731 = scalar_lea.sflag [#allocation4], 1
    %732 = vsyncpa %s731, 1

</llo_original>
